<compile_context>
chip_gen: v7x
topology: tpu7x:2x2x1
jax: 0.10.0
libtpu: 0.0.40
codegen_flags: <defaults>
</compile_context>

<pallas_src>
import jax
import jax.numpy as jnp
from jax.experimental import pallas as pl
from jax.experimental.pallas import tpu as pltpu


def gatedgcn_kernel(h_t_ref, e_t_ref, src_t_ref, dst_t_ref, dst_oh_ref,
                    wn_t_ref, bn_t_ref, wc_t_ref, bc_t_ref,
                    h_out_ref, e_out_ref, packed_scr):
    f32 = jnp.float32
    D = h_out_ref.shape[0]        # Dout (feature axis lives on sublanes)

    h_t = h_t_ref[...]            # (Din, N)   feature-major node features
    e_t = e_t_ref[...]            # (Din, E)   feature-major edge features

    # ---- Fused node projections, computed transposed: one (4D, Din) @ (Din, N) matmul.
    # Row order of the fused weight: [ D ; B ; E ; A ].
    proj_t = jnp.dot(wn_t_ref[...], h_t, preferred_element_type=f32) + bn_t_ref[...]  # (4D, N)
    DB_t = proj_t[0:2 * D, :]          # [Dh_t ; Bh_t]   (2D, N)  -- free sublane slice
    Eh_t = proj_t[2 * D:3 * D, :]      # (D, N)
    Ah_t = proj_t[3 * D:4 * D, :]      # (D, N)

    # ---- Edge projection, feature-major: (D, Din) @ (Din, E).
    Ce_t = jnp.dot(wc_t_ref[...], e_t, preferred_element_type=f32) + bc_t_ref[...]    # (D, E)

    # ---- Gather (E on lanes): [Dh;Bh] @ src_onehot^T  and  Eh @ dst_onehot^T.
    g_src = jnp.dot(DB_t, src_t_ref[...], preferred_element_type=f32)   # (2D, E)
    g_dst = jnp.dot(Eh_t, dst_t_ref[...], preferred_element_type=f32)   # (D, E)

    # apply_edges(u_add_v) + Ce; gate. All lane-dense (D, E) vregs.
    e_new_t = g_src[0:D, :] + g_dst + Ce_t            # Dh[src] + Eh[dst] + Ce
    sigma_t = jax.nn.sigmoid(e_new_t)                 # edata['sigma']     (EUP)
    msg_t = g_src[D:2 * D, :] * sigma_t               # u_mul_e('Bh','sigma')

    # ---- Fused scatter-sum over incoming edges: [msg ; sigma] @ dst_onehot, K=E=256.
    packed_scr[0:D, :] = msg_t                        # tile-aligned sublane writes
    packed_scr[D:2 * D, :] = sigma_t
    scat_t = jnp.dot(packed_scr[...], dst_oh_ref[...], preferred_element_type=f32)    # (2D, N)
    sum_sigma_h_t = scat_t[0:D, :]
    sum_sigma_t = scat_t[D:2 * D, :]

    h_new_t = Ah_t + sum_sigma_h_t / (sum_sigma_t + 1e-6)

    # batch_norm=False -> skip BN; relu; residual (Din == Dout); dropout p=0.0 -> identity.
    # TODO(synk): stochastic dropout (training mode, p>0) not implemented; p=0.0 => identity.
    h_out_ref[...] = (jnp.maximum(h_new_t, 0.0) + h_t).astype(h_out_ref.dtype)
    e_out_ref[...] = (jnp.maximum(e_new_t, 0.0) + e_t).astype(e_out_ref.dtype)


def prepare_statics(params, src_idx, dst_idx, num_nodes):
    """Per-graph / per-layer constants. Compute ONCE and reuse across forward calls."""
    f32 = jnp.float32
    # Fused node weight/bias, transposed; row order [ D ; B ; E ; A ] -> (4*Dout, Din).
    wn_t = jnp.concatenate(
        [params["WD"], params["WB"], params["WE"], params["WA"]], axis=1).T
    bn_t = jnp.concatenate(
        [params["bD"], params["bB"], params["bE"], params["bA"]], axis=1).T   # (4D, 1)
    wc_t = params["WC"].T                                                     # (D, Din)
    bc_t = params["bC"].T                                                     # (D, 1)
    dst_oh = jax.nn.one_hot(dst_idx, num_nodes, dtype=f32)                    # (E, N)
    src_t = jax.nn.one_hot(src_idx, num_nodes, dtype=f32).T                   # (N, E)
    dst_t = dst_oh.T                                                          # (N, E)
    return dict(wn_t=wn_t, bn_t=bn_t, wc_t=wc_t, bc_t=bc_t,
                src_t=src_t, dst_t=dst_t, dst_oh=dst_oh)


def gatedgcn_forward(h, e, statics):
    N, Din = h.shape
    E = e.shape[0]
    Dout = statics["wc_t"].shape[0]

    h_t = h.T     # (Din, N)  feature-major activations (tiny per-call transposes)
    e_t = e.T     # (Din, E)

    ins = (h_t, e_t, statics["src_t"], statics["dst_t"], statics["dst_oh"],
           statics["wn_t"], statics["bn_t"], statics["wc_t"], statics["bc_t"])

    flops = 2 * (4 * Dout * Din * N       # fused node projection
                 + Dout * Din * E         # Ce
                 + 2 * Dout * N * E       # gather, src side
                 + Dout * N * E           # gather, dst side
                 + 2 * Dout * E * N)      # fused scatter
    bytes_accessed = 4 * (sum(int(x.size) for x in ins) + Dout * N + Dout * E)

    vmem = pl.BlockSpec(memory_space=pltpu.MemorySpace.VMEM)
    h_out_t, e_out_t = pl.pallas_call(
        gatedgcn_kernel,
        out_shape=(jax.ShapeDtypeStruct((Dout, N), h.dtype),
                   jax.ShapeDtypeStruct((Dout, E), e.dtype)),
        in_specs=[vmem] * len(ins),
        out_specs=(vmem, vmem),
        scratch_shapes=[pltpu.VMEM((2 * Dout, E), jnp.float32)],
        input_output_aliases={0: 0, 1: 1},   # h_t -> h_out_t, e_t -> e_out_t
        cost_estimate=pl.CostEstimate(flops=int(flops),
                                      transcendentals=int(E * Dout),
                                      bytes_accessed=int(bytes_accessed)),
    )(*ins)
    # TODO(synk): in a multi-layer / batched model keep h,e feature-major across layers
    #   (dropping these transposes) and batch graphs along M so the K=32 matmuls and
    #   v7x's second TensorCore pay off.
    return h_out_t.T, e_out_t.T


def reference_forward(h, e, src_idx, dst_idx, params):
    """Pure-JAX reference of the DGL GatedGCN forward (residual, no BN, p=0)."""
    lin = lambda x, W, b: x @ W + b
    Ah = lin(h, params["WA"], params["bA"])
    Bh = lin(h, params["WB"], params["bB"])
    Dh = lin(h, params["WD"], params["bD"])
    Eh = lin(h, params["WE"], params["bE"])
    Ce = lin(e, params["WC"], params["bC"])
    e_new = Dh[src_idx] + Eh[dst_idx] + Ce
    sigma = jax.nn.sigmoid(e_new)
    N = h.shape[0]
    sum_sigma_h = jnp.zeros((N, Bh.shape[1]), h.dtype).at[dst_idx].add(Bh[src_idx] * sigma)
    sum_sigma = jnp.zeros((N, Bh.shape[1]), h.dtype).at[dst_idx].add(sigma)
    h_new = Ah + sum_sigma_h / (sum_sigma + 1e-6)
    return jnp.maximum(h_new, 0.0) + h, jnp.maximum(e_new, 0.0) + e


if __name__ == "__main__":
    N, E, D = 64, 256, 32   # nodes, edges, hidden (input_dim == output_dim)

    key = jax.random.PRNGKey(0)
    keys = jax.random.split(key, 16)

    # Deterministic "PyTorch-Linear-like" init: uniform(-1/sqrt(fan_in), 1/sqrt(fan_in)).
    bound = 1.0 / jnp.sqrt(jnp.float32(D))
    def mk_w(k):
        return jax.random.uniform(k, (D, D), jnp.float32, -bound, bound)
    def mk_b(k):
        return jax.random.uniform(k, (1, D), jnp.float32, -bound, bound)

    params = {
        "WA": mk_w(keys[0]), "bA": mk_b(keys[1]),
        "WB": mk_w(keys[2]), "bB": mk_b(keys[3]),
        "WC": mk_w(keys[4]), "bC": mk_b(keys[5]),
        "WD": mk_w(keys[6]), "bD": mk_b(keys[7]),
        "WE": mk_w(keys[8]), "bE": mk_b(keys[9]),
    }

    h = jax.random.normal(keys[10], (N, D), jnp.float32)
    e = jax.random.normal(keys[11], (E, D), jnp.float32)

    # Deterministic random graph: E directed edges over N nodes.
    src_idx = jax.random.randint(keys[12], (E,), 0, N)
    dst_idx = jax.random.randint(keys[13], (E,), 0, N)

    # Static (per-graph / per-layer) tensors prepared once, outside the per-call path.
    statics = prepare_statics(params, src_idx, dst_idx, N)
    statics = jax.tree_util.tree_map(jax.block_until_ready, statics)

    fwd = jax.jit(gatedgcn_forward)
    h_out, e_out = fwd(h, e, statics)
    jax.block_until_ready((h_out, e_out))

    h_ref, e_ref = reference_forward(h, e, src_idx, dst_idx, params)
    assert jnp.allclose(h_out, h_ref, atol=1e-4, rtol=1e-4), "h mismatch vs reference"
    assert jnp.allclose(e_out, e_ref, atol=1e-4, rtol=1e-4), "e mismatch vs reference"

    print("KERNEL_OK")
</pallas_src>

<mosaic_0001>
module attributes {stable_mosaic.version = 11 : i64} {
  func.func @gatedgcn_kernel(%arg0: memref<32x64xf32, #tpu.memory_space<vmem>>, %arg1: memref<32x256xf32, #tpu.memory_space<vmem>>, %arg2: memref<64x256xf32, #tpu.memory_space<vmem>>, %arg3: memref<64x256xf32, #tpu.memory_space<vmem>>, %arg4: memref<256x64xf32, #tpu.memory_space<vmem>>, %arg5: memref<128x32xf32, #tpu.memory_space<vmem>>, %arg6: memref<128x1xf32, #tpu.memory_space<vmem>>, %arg7: memref<32x32xf32, #tpu.memory_space<vmem>>, %arg8: memref<32x1xf32, #tpu.memory_space<vmem>>, %arg9: memref<32x64xf32, #tpu.memory_space<vmem>>, %arg10: memref<32x256xf32, #tpu.memory_space<vmem>>, %arg11: memref<64x256xf32, #tpu.memory_space<vmem>>) attributes {dimension_semantics = [], scalar_prefetch = 0 : i64, scratch_operands = 1 : i64, tpu.core_type = #tpu.core_type<tc>} {
    %c0 = arith.constant 0 : index
    %c0_0 = arith.constant 0 : index
    %0 = vector.load %arg0[%c0, %c0_0] : memref<32x64xf32, #tpu.memory_space<vmem>>, vector<32x64xf32>
    %c0_1 = arith.constant 0 : index
    %c0_2 = arith.constant 0 : index
    %1 = vector.load %arg1[%c0_1, %c0_2] : memref<32x256xf32, #tpu.memory_space<vmem>>, vector<32x256xf32>
    %c0_3 = arith.constant 0 : index
    %c0_4 = arith.constant 0 : index
    %2 = vector.load %arg5[%c0_3, %c0_4] : memref<128x32xf32, #tpu.memory_space<vmem>>, vector<128x32xf32>
    %cst = arith.constant dense<0.000000e+00> : vector<128x64xf32>
    %3 = tpu.matmul %2, %0, %cst {dimension_numbers = #tpu.dot_dimension_numbers<[1], [0], [0], [1], [0, 0, 1, 1], [], []>} : vector<128x32xf32>, vector<32x64xf32>, vector<128x64xf32> -> vector<128x64xf32>
    %c0_5 = arith.constant 0 : index
    %c0_6 = arith.constant 0 : index
    %4 = vector.load %arg6[%c0_5, %c0_6] : memref<128x1xf32, #tpu.memory_space<vmem>>, vector<128x1xf32>
    %5 = vector.broadcast %4 : vector<128x1xf32> to vector<128x64xf32>
    %6 = arith.addf %3, %5 : vector<128x64xf32>
    %7 = vector.extract_strided_slice %6 {offsets = [0, 0], sizes = [64, 64], strides = [1, 1]} : vector<128x64xf32> to vector<64x64xf32>
    %8 = vector.extract_strided_slice %6 {offsets = [64, 0], sizes = [32, 64], strides = [1, 1]} : vector<128x64xf32> to vector<32x64xf32>
    %9 = vector.extract_strided_slice %6 {offsets = [96, 0], sizes = [32, 64], strides = [1, 1]} : vector<128x64xf32> to vector<32x64xf32>
    %c0_7 = arith.constant 0 : index
    %c0_8 = arith.constant 0 : index
    %10 = vector.load %arg7[%c0_7, %c0_8] : memref<32x32xf32, #tpu.memory_space<vmem>>, vector<32x32xf32>
    %cst_9 = arith.constant dense<0.000000e+00> : vector<32x256xf32>
    %11 = tpu.matmul %10, %1, %cst_9 {dimension_numbers = #tpu.dot_dimension_numbers<[1], [0], [0], [1], [0, 0, 1, 1], [], []>} : vector<32x32xf32>, vector<32x256xf32>, vector<32x256xf32> -> vector<32x256xf32>
    %c0_10 = arith.constant 0 : index
    %c0_11 = arith.constant 0 : index
    %12 = vector.load %arg8[%c0_10, %c0_11] : memref<32x1xf32, #tpu.memory_space<vmem>>, vector<32x1xf32>
    %13 = vector.broadcast %12 : vector<32x1xf32> to vector<32x256xf32>
    %14 = arith.addf %11, %13 : vector<32x256xf32>
    %c0_12 = arith.constant 0 : index
    %c0_13 = arith.constant 0 : index
    %15 = vector.load %arg2[%c0_12, %c0_13] : memref<64x256xf32, #tpu.memory_space<vmem>>, vector<64x256xf32>
    %cst_14 = arith.constant dense<0.000000e+00> : vector<64x256xf32>
    %16 = tpu.matmul %7, %15, %cst_14 {dimension_numbers = #tpu.dot_dimension_numbers<[1], [0], [0], [1], [0, 0, 1, 1], [], []>} : vector<64x64xf32>, vector<64x256xf32>, vector<64x256xf32> -> vector<64x256xf32>
    %c0_15 = arith.constant 0 : index
    %c0_16 = arith.constant 0 : index
    %17 = vector.load %arg3[%c0_15, %c0_16] : memref<64x256xf32, #tpu.memory_space<vmem>>, vector<64x256xf32>
    %cst_17 = arith.constant dense<0.000000e+00> : vector<32x256xf32>
    %18 = tpu.matmul %8, %17, %cst_17 {dimension_numbers = #tpu.dot_dimension_numbers<[1], [0], [0], [1], [0, 0, 1, 1], [], []>} : vector<32x64xf32>, vector<64x256xf32>, vector<32x256xf32> -> vector<32x256xf32>
    %19 = vector.extract_strided_slice %16 {offsets = [0, 0], sizes = [32, 256], strides = [1, 1]} : vector<64x256xf32> to vector<32x256xf32>
    %20 = arith.addf %19, %18 : vector<32x256xf32>
    %21 = arith.addf %20, %14 : vector<32x256xf32>
    %22 = arith.negf %21 : vector<32x256xf32>
    %23 = math.exp %22 : vector<32x256xf32>
    %cst_18 = arith.constant 1.000000e+00 : f32
    %24 = vector.broadcast %cst_18 : f32 to vector<32x256xf32>
    %25 = arith.addf %24, %23 : vector<32x256xf32>
    %26 = arith.divf %24, %25 : vector<32x256xf32>
    %27 = vector.extract_strided_slice %16 {offsets = [32, 0], sizes = [32, 256], strides = [1, 1]} : vector<64x256xf32> to vector<32x256xf32>
    %28 = arith.mulf %27, %26 : vector<32x256xf32>
    %c0_19 = arith.constant 0 : index
    %c0_20 = arith.constant 0 : index
    %29 = vector.load %arg11[%c0_19, %c0_20] : memref<64x256xf32, #tpu.memory_space<vmem>>, vector<32x256xf32>
    tpu.vector_store %arg11[%c0_19, %c0_20], %28 {strides = array<i32>} : memref<64x256xf32, #tpu.memory_space<vmem>>, vector<32x256xf32>,
    %c32 = arith.constant 32 : index
    %c0_21 = arith.constant 0 : index
    %30 = vector.load %arg11[%c32, %c0_21] : memref<64x256xf32, #tpu.memory_space<vmem>>, vector<32x256xf32>
    tpu.vector_store %arg11[%c32, %c0_21], %26 {strides = array<i32>} : memref<64x256xf32, #tpu.memory_space<vmem>>, vector<32x256xf32>,
    %c0_22 = arith.constant 0 : index
    %c0_23 = arith.constant 0 : index
    %31 = vector.load %arg11[%c0_22, %c0_23] : memref<64x256xf32, #tpu.memory_space<vmem>>, vector<64x256xf32>
    %c0_24 = arith.constant 0 : index
    %c0_25 = arith.constant 0 : index
    %32 = vector.load %arg4[%c0_24, %c0_25] : memref<256x64xf32, #tpu.memory_space<vmem>>, vector<256x64xf32>
    %cst_26 = arith.constant dense<0.000000e+00> : vector<64x64xf32>
    %33 = tpu.matmul %31, %32, %cst_26 {dimension_numbers = #tpu.dot_dimension_numbers<[1], [0], [0], [1], [0, 0, 1, 1], [], []>} : vector<64x256xf32>, vector<256x64xf32>, vector<64x64xf32> -> vector<64x64xf32>
    %34 = vector.extract_strided_slice %33 {offsets = [0, 0], sizes = [32, 64], strides = [1, 1]} : vector<64x64xf32> to vector<32x64xf32>
    %35 = vector.extract_strided_slice %33 {offsets = [32, 0], sizes = [32, 64], strides = [1, 1]} : vector<64x64xf32> to vector<32x64xf32>
    %cst_27 = arith.constant 9.99999997E-7 : f32
    %36 = vector.broadcast %cst_27 : f32 to vector<32x64xf32>
    %37 = arith.addf %35, %36 : vector<32x64xf32>
    %38 = arith.divf %34, %37 : vector<32x64xf32>
    %39 = arith.addf %9, %38 : vector<32x64xf32>
    %cst_28 = arith.constant 0.000000e+00 : f32
    %40 = vector.broadcast %cst_28 : f32 to vector<32x64xf32>
    %41 = arith.maximumf %39, %40 : vector<32x64xf32>
    %42 = arith.addf %41, %0 : vector<32x64xf32>
    %c0_29 = arith.constant 0 : index
    %c0_30 = arith.constant 0 : index
    %43 = vector.load %arg9[%c0_29, %c0_30] : memref<32x64xf32, #tpu.memory_space<vmem>>, vector<32x64xf32>
    tpu.vector_store %arg9[%c0_29, %c0_30], %42 {strides = array<i32>} : memref<32x64xf32, #tpu.memory_space<vmem>>, vector<32x64xf32>,
    %cst_31 = arith.constant 0.000000e+00 : f32
    %44 = vector.broadcast %cst_31 : f32 to vector<32x256xf32>
    %45 = arith.maximumf %21, %44 : vector<32x256xf32>
    %46 = arith.addf %45, %1 : vector<32x256xf32>
    %c0_32 = arith.constant 0 : index
    %c0_33 = arith.constant 0 : index
    %47 = vector.load %arg10[%c0_32, %c0_33] : memref<32x256xf32, #tpu.memory_space<vmem>>, vector<32x256xf32>
    tpu.vector_store %arg10[%c0_32, %c0_33], %46 {strides = array<i32>} : memref<32x256xf32, #tpu.memory_space<vmem>>, vector<32x256xf32>,
    return
  }
}

</mosaic_0001>

<llo_original>
// kernel: gatedgcn_forward.1
$region0: #{gatedgcn_forward.1}
  #allocation0 [shape = 'u32[]', space=smem, size = 0x4, offset = 0x4, fixed_abs, tag = 'smem constant byte address 0x4 - core index']
  #allocation1 [shape = 'u32[144,128]{1,0:T(1,128)}', space=vmem, size = 0x12000, scoped, tag = 'internal scratch']
  #allocation2 [shape = 'f32[64,256]{1,0:T(8,128)}', space=vmem, size = 0x10000, scoped, tag = 'scratch operand']
  %s0 = inlined_call_operand.vmem [shape: f32[32,64], index: 0, kind: input, shape index: {}, may-alias: {0,9}]
  %s1 = inlined_call_operand.vmem [shape: f32[32,256], index: 1, kind: input, shape index: {}, may-alias: {1,10}]
  %s2 = inlined_call_operand.vmem [shape: f32[64,256], index: 2, kind: input, shape index: {}]
  %s3 = inlined_call_operand.vmem [shape: f32[64,256], index: 3, kind: input, shape index: {}]
  %s4 = inlined_call_operand.vmem [shape: f32[256,64], index: 4, kind: input, shape index: {}]
  %s5 = inlined_call_operand.vmem [shape: f32[128,32], index: 5, kind: input, shape index: {}]
  %s6 = inlined_call_operand.vmem [shape: f32[128,1], index: 6, kind: input, shape index: {}]
  %s7 = inlined_call_operand.vmem [shape: f32[32,32], index: 7, kind: input, shape index: {}]
  %s8 = inlined_call_operand.vmem [shape: f32[32,1], index: 8, kind: input, shape index: {}]
  %s9 = inlined_call_operand.vmem [shape: f32[32,64], index: 9, kind: output, shape index: {0}, may-alias: {0,9}]
  %s10 = inlined_call_operand.vmem [shape: f32[32,256], index: 10, kind: output, shape index: {1}, may-alias: {1,10}]
  %11 = xla_tuple %s9, %s10
  %s12 = sld [smem:[#allocation0]]
  $region54: #{gatedgcn_forward.1} parent=0
    _
  %s14 = ssub.s32 1, %s12
  %s15 = scalar_select 0, %s14, %s12
  // Predicated region
  $region2: #{gatedgcn_forward.1} parent=0 // pred_check
    _
  $region3: #{gatedgcn_forward.1} parent=0 // pred_check_branch
    %17 = sbr.rel (0) target = $region5
  $region4: #{gatedgcn_forward.1} parent=0 // pred_region
    _
  $region5: #{gatedgcn_forward.1} parent=0 // pred_fallthru
    _
  // Predicated region
  $region6: #{gatedgcn_forward.1} parent=0 // pred_check
    _
  $region7: #{gatedgcn_forward.1} parent=0 // pred_check_branch
    %19 = sbr.rel (0) target = $region9
  $region8: #{gatedgcn_forward.1} parent=0 // pred_region
    _
  $region9: #{gatedgcn_forward.1} parent=0 // pred_fallthru
    _
  // Predicated region
  $region10: #{gatedgcn_forward.1} parent=0 // pred_check
    _
  $region11: #{gatedgcn_forward.1} parent=0 // pred_check_branch
    %21 = sbr.rel (0) target = $region13
  $region12: #{gatedgcn_forward.1} parent=0 // pred_region
    _
  $region13: #{gatedgcn_forward.1} parent=0 // pred_fallthru
    _
  // Predicated region
  $region14: #{gatedgcn_forward.1} parent=0 // pred_check
    _
  $region15: #{gatedgcn_forward.1} parent=0 // pred_check_branch
    %23 = sbr.rel (0) target = $region17
  $region16: #{gatedgcn_forward.1} parent=0 // pred_region
    _
  $region17: #{gatedgcn_forward.1} parent=0 // pred_fallthru
    _
  // Predicated region
  $region18: #{gatedgcn_forward.1} parent=0 // pred_check
    _
  $region19: #{gatedgcn_forward.1} parent=0 // pred_check_branch
    %25 = sbr.rel (0) target = $region21
  $region20: #{gatedgcn_forward.1} parent=0 // pred_region
    _
  $region21: #{gatedgcn_forward.1} parent=0 // pred_fallthru
    _
  // Predicated region
  $region22: #{gatedgcn_forward.1} parent=0 // pred_check
    _
  $region23: #{gatedgcn_forward.1} parent=0 // pred_check_branch
    %27 = sbr.rel (0) target = $region25
  $region24: #{gatedgcn_forward.1} parent=0 // pred_region
    _
  $region25: #{gatedgcn_forward.1} parent=0 // pred_fallthru
    _
  // Predicated region
  $region26: #{gatedgcn_forward.1} parent=0 // pred_check
    _
  $region27: #{gatedgcn_forward.1} parent=0 // pred_check_branch
    %29 = sbr.rel (0) target = $region29
  $region28: #{gatedgcn_forward.1} parent=0 // pred_region
    _
  $region29: #{gatedgcn_forward.1} parent=0 // pred_fallthru
    _
  // Predicated region
  $region30: #{gatedgcn_forward.1} parent=0 // pred_check
    _
  $region31: #{gatedgcn_forward.1} parent=0 // pred_check_branch
    %31 = sbr.rel (0) target = $region33
  $region32: #{gatedgcn_forward.1} parent=0 // pred_region
    _
  $region33: #{gatedgcn_forward.1} parent=0 // pred_fallthru
    _
  // Predicated region
  $region34: #{gatedgcn_forward.1} parent=0 // pred_check
    _
  $region35: #{gatedgcn_forward.1} parent=0 // pred_check_branch
    %33 = sbr.rel (0) target = $region37
  $region36: #{gatedgcn_forward.1} parent=0 // pred_region
    _
  $region37: #{gatedgcn_forward.1} parent=0 // pred_fallthru
    _
  %v34 = vld [vmem:[%s0] sm:$0xff]
  %v35 = vld [vmem:[%s0 + $0x8] sm:$0xff]
  %v36 = vld [vmem:[%s0 + $0x10] sm:$0xff]
  %v37 = vld [vmem:[%s0 + $0x18] sm:$0xff]
  %v38 = vld [vmem:[%s1] sm:$0xff]
  %v39 = vld [vmem:[%s1 + $0x8] sm:$0xff]
  %v40 = vld [vmem:[%s1 + $0x10] sm:$0xff]
  %v41 = vld [vmem:[%s1 + $0x18] sm:$0xff]
  %v42 = vld [vmem:[%s1 + $0x20] sm:$0xff]
  %v43 = vld [vmem:[%s1 + $0x28] sm:$0xff]
  %v44 = vld [vmem:[%s1 + $0x30] sm:$0xff]
  %v45 = vld [vmem:[%s1 + $0x38] sm:$0xff]
  %v46 = vld [vmem:[%s5] sm:$0xff]
  %v47 = vld [vmem:[%s5 + $0x8] sm:$0xff]
  %v48 = vld [vmem:[%s5 + $0x10] sm:$0xff]
  %v49 = vld [vmem:[%s5 + $0x18] sm:$0xff]
  %v50 = vld [vmem:[%s5 + $0x20] sm:$0xff]
  %v51 = vld [vmem:[%s5 + $0x28] sm:$0xff]
  %v52 = vld [vmem:[%s5 + $0x30] sm:$0xff]
  %v53 = vld [vmem:[%s5 + $0x38] sm:$0xff]
  %v54 = vld [vmem:[%s5 + $0x40] sm:$0xff]
  %v55 = vld [vmem:[%s5 + $0x48] sm:$0xff]
  %v56 = vld [vmem:[%s5 + $0x50] sm:$0xff]
  %v57 = vld [vmem:[%s5 + $0x58] sm:$0xff]
  %v58 = vld [vmem:[%s5 + $0x60] sm:$0xff]
  %v59 = vld [vmem:[%s5 + $0x68] sm:$0xff]
  %v60 = vld [vmem:[%s5 + $0x70] sm:$0xff]
  %v61 = vld [vmem:[%s5 + $0x78] sm:$0xff]
  %v62 = vld [vmem:[%s6] sm:$0xff]
  %v63 = vld [vmem:[%s6 + $0x8] sm:$0xff]
  %v64 = vld [vmem:[%s6 + $0x10] sm:$0xff]
  %v65 = vld [vmem:[%s6 + $0x18] sm:$0xff]
  %v66 = vld [vmem:[%s6 + $0x20] sm:$0xff]
  %v67 = vld [vmem:[%s6 + $0x28] sm:$0xff]
  %v68 = vld [vmem:[%s6 + $0x30] sm:$0xff]
  %v69 = vld [vmem:[%s6 + $0x38] sm:$0xff]
  %v70 = vld [vmem:[%s6 + $0x40] sm:$0xff]
  %v71 = vld [vmem:[%s6 + $0x48] sm:$0xff]
  %v72 = vld [vmem:[%s6 + $0x50] sm:$0xff]
  %v73 = vld [vmem:[%s6 + $0x58] sm:$0xff]
  %v74 = vld [vmem:[%s6 + $0x60] sm:$0xff]
  %v75 = vld [vmem:[%s6 + $0x68] sm:$0xff]
  %v76 = vld [vmem:[%s6 + $0x70] sm:$0xff]
  %v77 = vld [vmem:[%s6 + $0x78] sm:$0xff]
  %79 = vset.pattern.permute.xlu0 0
  %80 = vperm.xlu0 %79, %v62
  %v81 = vpop.permute.xlu0 %80
  %84 = vset.pattern.permute.xlu0 0
  %85 = vperm.xlu0 %84, %v63
  %v86 = vpop.permute.xlu0 %85
  %89 = vset.pattern.permute.xlu0 0
  %90 = vperm.xlu0 %89, %v64
  %v91 = vpop.permute.xlu0 %90
  %94 = vset.pattern.permute.xlu0 0
  %95 = vperm.xlu0 %94, %v65
  %v96 = vpop.permute.xlu0 %95
  %99 = vset.pattern.permute.xlu0 0
  %100 = vperm.xlu0 %99, %v66
  %v101 = vpop.permute.xlu0 %100
  %104 = vset.pattern.permute.xlu0 0
  %105 = vperm.xlu0 %104, %v67
  %v106 = vpop.permute.xlu0 %105
  %109 = vset.pattern.permute.xlu0 0
  %110 = vperm.xlu0 %109, %v68
  %v111 = vpop.permute.xlu0 %110
  %114 = vset.pattern.permute.xlu0 0
  %115 = vperm.xlu0 %114, %v69
  %v116 = vpop.permute.xlu0 %115
  %119 = vset.pattern.permute.xlu0 0
  %120 = vperm.xlu0 %119, %v70
  %v121 = vpop.permute.xlu0 %120
  %124 = vset.pattern.permute.xlu0 0
  %125 = vperm.xlu0 %124, %v71
  %v126 = vpop.permute.xlu0 %125
  %129 = vset.pattern.permute.xlu0 0
  %130 = vperm.xlu0 %129, %v72
  %v131 = vpop.permute.xlu0 %130
  %134 = vset.pattern.permute.xlu0 0
  %135 = vperm.xlu0 %134, %v73
  %v136 = vpop.permute.xlu0 %135
  %139 = vset.pattern.permute.xlu0 0
  %140 = vperm.xlu0 %139, %v74
  %v141 = vpop.permute.xlu0 %140
  %144 = vset.pattern.permute.xlu0 0
  %145 = vperm.xlu0 %144, %v75
  %v146 = vpop.permute.xlu0 %145
  %149 = vset.pattern.permute.xlu0 0
  %150 = vperm.xlu0 %149, %v76
  %v151 = vpop.permute.xlu0 %150
  %154 = vset.pattern.permute.xlu0 0
  %155 = vperm.xlu0 %154, %v77
  %v156 = vpop.permute.xlu0 %155
  %vm158 = vcmask 261120
  %v160 = vsel %vm158, %v46, 0
  %v163 = vsel %vm158, %v47, 0
  %v166 = vsel %vm158, %v48, 0
  %v169 = vsel %vm158, %v49, 0
  %v172 = vsel %vm158, %v50, 0
  %v175 = vsel %vm158, %v51, 0
  %v178 = vsel %vm158, %v52, 0
  %v181 = vsel %vm158, %v53, 0
  %v184 = vsel %vm158, %v54, 0
  %v187 = vsel %vm158, %v55, 0
  %v190 = vsel %vm158, %v56, 0
  %v193 = vsel %vm158, %v57, 0
  %v196 = vsel %vm158, %v58, 0
  %v199 = vsel %vm158, %v59, 0
  %v202 = vsel %vm158, %v60, 0
  %v205 = vsel %vm158, %v61, 0
  %207 = vmatprep.subr.mxu0 0.0
  %208 = vmatpush1.msra.mxu0 %v34
  %209 = vmatprep.subr.mxu0 0.0
  %210 = vmatpush1.msra.mxu0 %v35
  %211 = vmatprep.subr.mxu0 0.0
  %212 = vmatpush1.msra.mxu0 %v36
  %213 = vmatprep.subr.mxu0 0.0
  %214 = vmatpush1.msra.mxu0 %v37
  %215 = vmatprep.subr.mxu0 0.0
  %216 = vmatpush1.msra.mxu0 0.0
  %217 = vmatprep.subr.mxu0 0.0
  %218 = vmatpush1.msra.mxu0 0.0
  %219 = vmatprep.subr.mxu0 0.0
  %220 = vmatpush1.msra.mxu0 0.0
  %221 = vmatprep.subr.mxu0 0.0
  %222 = vmatpush1.msra.mxu0 0.0
  %223 = vmatprep.subr.mxu0 0.0
  %224 = vmatpush1.msra.mxu0 0.0
  %225 = vmatprep.subr.mxu0 0.0
  %226 = vmatpush1.msra.mxu0 0.0
  %227 = vmatprep.subr.mxu0 0.0
  %228 = vmatpush1.msra.mxu0 0.0
  %229 = vmatprep.subr.mxu0 0.0
  %230 = vmatpush1.msra.mxu0 0.0
  %231 = vmatprep.subr.mxu0 0.0
  %232 = vmatpush1.msra.mxu0 0.0
  %233 = vmatprep.subr.mxu0 0.0
  %234 = vmatpush1.msra.mxu0 0.0
  %235 = vmatprep.subr.mxu0 0.0
  %236 = vmatpush1.msra.mxu0 0.0
  %237 = vmatprep.subr.mxu0 0.0
  %238 = vmatpush1.msra.mxu0 0.0
  %239 = vmatprep.subr.mxu0 0.0
  %240 = vmatpush1.msra.mxu0 0.0
  %241 = vmatprep.subr.mxu0 0.0
  %242 = vmatpush1.msra.mxu0 0.0
  %243 = vmatprep.subr.mxu0 0.0
  %244 = vmatpush1.msra.mxu0 0.0
  %245 = vmatprep.subr.mxu0 0.0
  %246 = vmatpush1.msra.mxu0 0.0
  %247 = vmatprep.subr.mxu0 0.0
  %248 = vmatpush1.msra.mxu0 0.0
  %249 = vmatprep.subr.mxu0 0.0
  %250 = vmatpush1.msra.mxu0 0.0
  %251 = vmatprep.subr.mxu0 0.0
  %252 = vmatpush1.msra.mxu0 0.0
  %253 = vmatprep.subr.mxu0 0.0
  %254 = vmatpush1.msra.mxu0 0.0
  %255 = vmatprep.subr.mxu0 0.0
  %256 = vmatpush1.msra.mxu0 0.0
  %257 = vmatprep.subr.mxu0 0.0
  %258 = vmatpush1.msra.mxu0 0.0
  %259 = vmatprep.subr.mxu0 0.0
  %260 = vmatpush1.msra.mxu0 0.0
  %261 = vmatprep.subr.mxu0 0.0
  %262 = vmatpush1.msra.mxu0 0.0
  %263 = vmatprep.subr.mxu0 0.0
  %264 = vmatpush1.msra.mxu0 0.0
  %265 = vmatprep.subr.mxu0 0.0
  %266 = vmatpush1.msra.mxu0 0.0
  %267 = vmatprep.subr.mxu0 0.0
  %268 = vmatpush1.msra.mxu0 0.0
  %269 = vmatprep.subr.mxu0 0.0
  %270 = vmatpush1.msra.mxu0 0.0
  %271 = vmatprep.mubr.f32.mxu0 0.0
  %272 = vmatmul.mubr.f32.gmra.mrb[0].mxu0 %v160
  %v273 = vpop.f32.mrb[0].mxu0
  %v274 = vadd.f32 %v81, %v273
  %v275 = vpop.f32.mrb[0].mxu0
  %276 = vmatprep.mubr.f32.mxu0 0.0
  %277 = vmatmul.mubr.f32.gmra.mrb[0].mxu0 %v163
  %v278 = vpop.f32.mrb[0].mxu0
  %v279 = vadd.f32 %v86, %v278
  %v280 = vpop.f32.mrb[0].mxu0
  %281 = vmatprep.mubr.f32.mxu0 0.0
  %282 = vmatmul.mubr.f32.gmra.mrb[0].mxu0 %v166
  %v283 = vpop.f32.mrb[0].mxu0
  %v284 = vadd.f32 %v91, %v283
  %v285 = vpop.f32.mrb[0].mxu0
  %286 = vmatprep.mubr.f32.mxu0 0.0
  %287 = vmatmul.mubr.f32.gmra.mrb[0].mxu0 %v169
  %v288 = vpop.f32.mrb[0].mxu0
  %v289 = vadd.f32 %v96, %v288
  %v290 = vpop.f32.mrb[0].mxu0
  %291 = vmatprep.mubr.f32.mxu0 0.0
  %292 = vmatmul.mubr.f32.gmra.mrb[0].mxu0 %v172
  %v293 = vpop.f32.mrb[0].mxu0
  %v294 = vadd.f32 %v101, %v293
  %v295 = vpop.f32.mrb[0].mxu0
  %296 = vmatprep.mubr.f32.mxu0 0.0
  %297 = vmatmul.mubr.f32.gmra.mrb[0].mxu0 %v175
  %v298 = vpop.f32.mrb[0].mxu0
  %v299 = vadd.f32 %v106, %v298
  %v300 = vpop.f32.mrb[0].mxu0
  %301 = vmatprep.mubr.f32.mxu0 0.0
  %302 = vmatmul.mubr.f32.gmra.mrb[0].mxu0 %v178
  %v303 = vpop.f32.mrb[0].mxu0
  %v304 = vadd.f32 %v111, %v303
  %v305 = vpop.f32.mrb[0].mxu0
  %306 = vmatprep.mubr.f32.mxu0 0.0
  %307 = vmatmul.mubr.f32.gmra.mrb[0].mxu0 %v181
  %v308 = vpop.f32.mrb[0].mxu0
  %v309 = vadd.f32 %v116, %v308
  %v310 = vpop.f32.mrb[0].mxu0
  %311 = vmatprep.mubr.f32.mxu0 0.0
  %312 = vmatmul.mubr.f32.gmra.mrb[0].mxu0 %v184
  %v313 = vpop.f32.mrb[0].mxu0
  %v314 = vadd.f32 %v121, %v313
  %v315 = vpop.f32.mrb[0].mxu0
  %316 = vmatprep.mubr.f32.mxu0 0.0
  %317 = vmatmul.mubr.f32.gmra.mrb[0].mxu0 %v187
  %v318 = vpop.f32.mrb[0].mxu0
  %v319 = vadd.f32 %v126, %v318
  %v320 = vpop.f32.mrb[0].mxu0
  %321 = vmatprep.mubr.f32.mxu0 0.0
  %322 = vmatmul.mubr.f32.gmra.mrb[0].mxu0 %v190
  %v323 = vpop.f32.mrb[0].mxu0
  %v324 = vadd.f32 %v131, %v323
  %v325 = vpop.f32.mrb[0].mxu0
  %326 = vmatprep.mubr.f32.mxu0 0.0
  %327 = vmatmul.mubr.f32.gmra.mrb[0].mxu0 %v193
  %v328 = vpop.f32.mrb[0].mxu0
  %v329 = vadd.f32 %v136, %v328
  %v330 = vpop.f32.mrb[0].mxu0
  %331 = vmatprep.mubr.f32.mxu0 0.0
  %332 = vmatmul.mubr.f32.gmra.mrb[0].mxu0 %v196
  %v333 = vpop.f32.mrb[0].mxu0
  %v334 = vadd.f32 %v141, %v333
  %v335 = vpop.f32.mrb[0].mxu0
  %336 = vmatprep.mubr.f32.mxu0 0.0
  %337 = vmatmul.mubr.f32.gmra.mrb[0].mxu0 %v199
  %v338 = vpop.f32.mrb[0].mxu0
  %v339 = vadd.f32 %v146, %v338
  %v340 = vpop.f32.mrb[0].mxu0
  %341 = vmatprep.mubr.f32.mxu0 0.0
  %342 = vmatmul.mubr.f32.gmra.mrb[0].mxu0 %v202
  %v343 = vpop.f32.mrb[0].mxu0
  %v344 = vadd.f32 %v151, %v343
  %v345 = vpop.f32.mrb[0].mxu0
  %346 = vmatprep.mubr.f32.mxu0 0.0
  %347 = vmatmul.mubr.f32.gmra.mrb[0].mxu0 %v205
  %v348 = vpop.f32.mrb[0].mxu0
  %v349 = vadd.f32 %v156, %v348
  %v350 = vpop.f32.mrb[0].mxu0
  %351 = vdwg.mxu0
  %v352 = vld [vmem:[%s7] sm:$0xff]
  %v353 = vld [vmem:[%s7 + $0x8] sm:$0xff]
  %v354 = vld [vmem:[%s7 + $0x10] sm:$0xff]
  %v355 = vld [vmem:[%s7 + $0x18] sm:$0xff]
  %v356 = vld [vmem:[%s8] sm:$0xff]
  %v357 = vld [vmem:[%s8 + $0x8] sm:$0xff]
  %v358 = vld [vmem:[%s8 + $0x10] sm:$0xff]
  %v359 = vld [vmem:[%s8 + $0x18] sm:$0xff]
  %361 = vset.pattern.permute.xlu0 0
  %362 = vperm.xlu0 %361, %v356
  %v363 = vpop.permute.xlu0 %362
  %366 = vset.pattern.permute.xlu0 0
  %367 = vperm.xlu0 %366, %v357
  %v368 = vpop.permute.xlu0 %367
  %371 = vset.pattern.permute.xlu0 0
  %372 = vperm.xlu0 %371, %v358
  %v373 = vpop.permute.xlu0 %372
  %376 = vset.pattern.permute.xlu0 0
  %377 = vperm.xlu0 %376, %v359
  %v378 = vpop.permute.xlu0 %377
  %v381 = vsel %vm158, %v352, 0
  %v384 = vsel %vm158, %v353, 0
  %v387 = vsel %vm158, %v354, 0
  %v390 = vsel %vm158, %v355, 0
  %392 = vmatprep.subr.mxu0 %v39
  %393 = vmatpush1.msra.mxu0 %v38
  %394 = vmatprep.subr.mxu0 %v41
  %395 = vmatpush1.msra.mxu0 %v40
  %396 = vmatprep.subr.mxu0 %v43
  %397 = vmatpush1.msra.mxu0 %v42
  %398 = vmatprep.subr.mxu0 %v45
  %399 = vmatpush1.msra.mxu0 %v44
  %400 = vmatprep.subr.mxu0 0.0
  %401 = vmatpush1.msra.mxu0 0.0
  %402 = vmatprep.subr.mxu0 0.0
  %403 = vmatpush1.msra.mxu0 0.0
  %404 = vmatprep.subr.mxu0 0.0
  %405 = vmatpush1.msra.mxu0 0.0
  %406 = vmatprep.subr.mxu0 0.0
  %407 = vmatpush1.msra.mxu0 0.0
  %408 = vmatprep.subr.mxu0 0.0
  %409 = vmatpush1.msra.mxu0 0.0
  %410 = vmatprep.subr.mxu0 0.0
  %411 = vmatpush1.msra.mxu0 0.0
  %412 = vmatprep.subr.mxu0 0.0
  %413 = vmatpush1.msra.mxu0 0.0
  %414 = vmatprep.subr.mxu0 0.0
  %415 = vmatpush1.msra.mxu0 0.0
  %416 = vmatprep.subr.mxu0 0.0
  %417 = vmatpush1.msra.mxu0 0.0
  %418 = vmatprep.subr.mxu0 0.0
  %419 = vmatpush1.msra.mxu0 0.0
  %420 = vmatprep.subr.mxu0 0.0
  %421 = vmatpush1.msra.mxu0 0.0
  %422 = vmatprep.subr.mxu0 0.0
  %423 = vmatpush1.msra.mxu0 0.0
  %424 = vmatprep.subr.mxu0 0.0
  %425 = vmatpush1.msra.mxu0 0.0
  %426 = vmatprep.subr.mxu0 0.0
  %427 = vmatpush1.msra.mxu0 0.0
  %428 = vmatprep.subr.mxu0 0.0
  %429 = vmatpush1.msra.mxu0 0.0
  %430 = vmatprep.subr.mxu0 0.0
  %431 = vmatpush1.msra.mxu0 0.0
  %432 = vmatprep.subr.mxu0 0.0
  %433 = vmatpush1.msra.mxu0 0.0
  %434 = vmatprep.subr.mxu0 0.0
  %435 = vmatpush1.msra.mxu0 0.0
  %436 = vmatprep.subr.mxu0 0.0
  %437 = vmatpush1.msra.mxu0 0.0
  %438 = vmatprep.subr.mxu0 0.0
  %439 = vmatpush1.msra.mxu0 0.0
  %440 = vmatprep.subr.mxu0 0.0
  %441 = vmatpush1.msra.mxu0 0.0
  %442 = vmatprep.subr.mxu0 0.0
  %443 = vmatpush1.msra.mxu0 0.0
  %444 = vmatprep.subr.mxu0 0.0
  %445 = vmatpush1.msra.mxu0 0.0
  %446 = vmatprep.subr.mxu0 0.0
  %447 = vmatpush1.msra.mxu0 0.0
  %448 = vmatprep.subr.mxu0 0.0
  %449 = vmatpush1.msra.mxu0 0.0
  %450 = vmatprep.subr.mxu0 0.0
  %451 = vmatpush1.msra.mxu0 0.0
  %452 = vmatprep.subr.mxu0 0.0
  %453 = vmatpush1.msra.mxu0 0.0
  %454 = vmatprep.subr.mxu0 0.0
  %455 = vmatpush1.msra.mxu0 0.0
  %456 = vmatprep.mubr.f32.mxu0 0.0
  %457 = vmatmul.mubr.f32.gmra.mrb[0].mxu0 %v381
  %v458 = vpop.f32.mrb[0].mxu0
  %v459 = vadd.f32 %v363, %v458
  %v460 = vpop.f32.mrb[0].mxu0
  %v461 = vadd.f32 %v363, %v460
  %462 = vmatprep.mubr.f32.mxu0 0.0
  %463 = vmatmul.mubr.f32.gmra.mrb[0].mxu0 %v384
  %v464 = vpop.f32.mrb[0].mxu0
  %v465 = vadd.f32 %v368, %v464
  %v466 = vpop.f32.mrb[0].mxu0
  %v467 = vadd.f32 %v368, %v466
  %468 = vmatprep.mubr.f32.mxu0 0.0
  %469 = vmatmul.mubr.f32.gmra.mrb[0].mxu0 %v387
  %v470 = vpop.f32.mrb[0].mxu0
  %v471 = vadd.f32 %v373, %v470
  %v472 = vpop.f32.mrb[0].mxu0
  %v473 = vadd.f32 %v373, %v472
  %474 = vmatprep.mubr.f32.mxu0 0.0
  %475 = vmatmul.mubr.f32.gmra.mrb[0].mxu0 %v390
  %v476 = vpop.f32.mrb[0].mxu0
  %v477 = vadd.f32 %v378, %v476
  %v478 = vpop.f32.mrb[0].mxu0
  %v479 = vadd.f32 %v378, %v478
  %480 = vdwg.mxu0
  %v481 = vld [vmem:[%s2] sm:$0xff]
  %v482 = vld [vmem:[%s2 + $0x8] sm:$0xff]
  %v483 = vld [vmem:[%s2 + $0x10] sm:$0xff]
  %v484 = vld [vmem:[%s2 + $0x18] sm:$0xff]
  %v485 = vld [vmem:[%s2 + $0x20] sm:$0xff]
  %v486 = vld [vmem:[%s2 + $0x28] sm:$0xff]
  %v487 = vld [vmem:[%s2 + $0x30] sm:$0xff]
  %v488 = vld [vmem:[%s2 + $0x38] sm:$0xff]
  %v489 = vld [vmem:[%s2 + $0x40] sm:$0xff]
  %v490 = vld [vmem:[%s2 + $0x48] sm:$0xff]
  %v491 = vld [vmem:[%s2 + $0x50] sm:$0xff]
  %v492 = vld [vmem:[%s2 + $0x58] sm:$0xff]
  %v493 = vld [vmem:[%s2 + $0x60] sm:$0xff]
  %v494 = vld [vmem:[%s2 + $0x68] sm:$0xff]
  %v495 = vld [vmem:[%s2 + $0x70] sm:$0xff]
  %v496 = vld [vmem:[%s2 + $0x78] sm:$0xff]
  %vm497 = vcmask 523264
  %v499 = vsel %vm497, %v274, 0
  %v502 = vsel %vm497, %v279, 0
  %v505 = vsel %vm497, %v284, 0
  %v508 = vsel %vm497, %v289, 0
  %v511 = vsel %vm497, %v294, 0
  %v514 = vsel %vm497, %v299, 0
  %v517 = vsel %vm497, %v304, 0
  %v520 = vsel %vm497, %v309, 0
  %522 = vmatprep.subr.mxu0 %v482
  %523 = vmatpush1.msra.mxu0 %v481
  %524 = vmatprep.subr.mxu0 %v484
  %525 = vmatpush1.msra.mxu0 %v483
  %526 = vmatprep.subr.mxu0 %v486
  %527 = vmatpush1.msra.mxu0 %v485
  %528 = vmatprep.subr.mxu0 %v488
  %529 = vmatpush1.msra.mxu0 %v487
  %530 = vmatprep.subr.mxu0 %v490
  %531 = vmatpush1.msra.mxu0 %v489
  %532 = vmatprep.subr.mxu0 %v492
  %533 = vmatpush1.msra.mxu0 %v491
  %534 = vmatprep.subr.mxu0 %v494
  %535 = vmatpush1.msra.mxu0 %v493
  %536 = vmatprep.subr.mxu0 %v496
  %537 = vmatpush1.msra.mxu0 %v495
  %538 = vmatprep.subr.mxu0 0.0
  %539 = vmatpush1.msra.mxu0 0.0
  %540 = vmatprep.subr.mxu0 0.0
  %541 = vmatpush1.msra.mxu0 0.0
  %542 = vmatprep.subr.mxu0 0.0
  %543 = vmatpush1.msra.mxu0 0.0
  %544 = vmatprep.subr.mxu0 0.0
  %545 = vmatpush1.msra.mxu0 0.0
  %546 = vmatprep.subr.mxu0 0.0
  %547 = vmatpush1.msra.mxu0 0.0
  %548 = vmatprep.subr.mxu0 0.0
  %549 = vmatpush1.msra.mxu0 0.0
  %550 = vmatprep.subr.mxu0 0.0
  %551 = vmatpush1.msra.mxu0 0.0
  %552 = vmatprep.subr.mxu0 0.0
  %553 = vmatpush1.msra.mxu0 0.0
  %554 = vmatprep.subr.mxu0 0.0
  %555 = vmatpush1.msra.mxu0 0.0
  %556 = vmatprep.subr.mxu0 0.0
  %557 = vmatpush1.msra.mxu0 0.0
  %558 = vmatprep.subr.mxu0 0.0
  %559 = vmatpush1.msra.mxu0 0.0
  %560 = vmatprep.subr.mxu0 0.0
  %561 = vmatpush1.msra.mxu0 0.0
  %562 = vmatprep.subr.mxu0 0.0
  %563 = vmatpush1.msra.mxu0 0.0
  %564 = vmatprep.subr.mxu0 0.0
  %565 = vmatpush1.msra.mxu0 0.0
  %566 = vmatprep.subr.mxu0 0.0
  %567 = vmatpush1.msra.mxu0 0.0
  %568 = vmatprep.subr.mxu0 0.0
  %569 = vmatpush1.msra.mxu0 0.0
  %570 = vmatprep.subr.mxu0 0.0
  %571 = vmatpush1.msra.mxu0 0.0
  %572 = vmatprep.subr.mxu0 0.0
  %573 = vmatpush1.msra.mxu0 0.0
  %574 = vmatprep.subr.mxu0 0.0
  %575 = vmatpush1.msra.mxu0 0.0
  %576 = vmatprep.subr.mxu0 0.0
  %577 = vmatpush1.msra.mxu0 0.0
  %578 = vmatprep.subr.mxu0 0.0
  %579 = vmatpush1.msra.mxu0 0.0
  %580 = vmatprep.subr.mxu0 0.0
  %581 = vmatpush1.msra.mxu0 0.0
  %582 = vmatprep.subr.mxu0 0.0
  %583 = vmatpush1.msra.mxu0 0.0
  %584 = vmatprep.subr.mxu0 0.0
  %585 = vmatpush1.msra.mxu0 0.0
  %586 = vmatprep.mubr.f32.mxu0 0.0
  %587 = vmatmul.mubr.f32.gmra.mrb[0].mxu0 %v499
  %v588 = vpop.f32.mrb[0].mxu0
  %v589 = vadd.f32 0.0, %v588
  %v590 = vpop.f32.mrb[0].mxu0
  %v591 = vadd.f32 0.0, %v590
  %592 = vmatprep.mubr.f32.mxu0 0.0
  %593 = vmatmul.mubr.f32.gmra.mrb[0].mxu0 %v502
  %v594 = vpop.f32.mrb[0].mxu0
  %v595 = vadd.f32 0.0, %v594
  %v596 = vpop.f32.mrb[0].mxu0
  %v597 = vadd.f32 0.0, %v596
  %598 = vmatprep.mubr.f32.mxu0 0.0
  %599 = vmatmul.mubr.f32.gmra.mrb[0].mxu0 %v505
  %v600 = vpop.f32.mrb[0].mxu0
  %v601 = vadd.f32 0.0, %v600
  %v602 = vpop.f32.mrb[0].mxu0
  %v603 = vadd.f32 0.0, %v602
  %604 = vmatprep.mubr.f32.mxu0 0.0
  %605 = vmatmul.mubr.f32.gmra.mrb[0].mxu0 %v508
  %v606 = vpop.f32.mrb[0].mxu0
  %v607 = vadd.f32 0.0, %v606
  %v608 = vpop.f32.mrb[0].mxu0
  %v609 = vadd.f32 0.0, %v608
  %610 = vmatprep.mubr.f32.mxu0 0.0
  %611 = vmatmul.mubr.f32.gmra.mrb[0].mxu0 %v511
  %v612 = vpop.f32.mrb[0].mxu0
  %v613 = vadd.f32 0.0, %v612
  %v614 = vpop.f32.mrb[0].mxu0
  %v615 = vadd.f32 0.0, %v614
  %616 = vmatprep.mubr.f32.mxu0 0.0
  %617 = vmatmul.mubr.f32.gmra.mrb[0].mxu0 %v514
  %v618 = vpop.f32.mrb[0].mxu0
  %v619 = vadd.f32 0.0, %v618
  %v620 = vpop.f32.mrb[0].mxu0
  %v621 = vadd.f32 0.0, %v620
  %622 = vmatprep.mubr.f32.mxu0 0.0
  %623 = vmatmul.mubr.f32.gmra.mrb[0].mxu0 %v517
  %v624 = vpop.f32.mrb[0].mxu0
  %v625 = vadd.f32 0.0, %v624
  %v626 = vpop.f32.mrb[0].mxu0
  %v627 = vadd.f32 0.0, %v626
  %628 = vmatprep.mubr.f32.mxu0 0.0
  %629 = vmatmul.mubr.f32.gmra.mrb[0].mxu0 %v520
  %v630 = vpop.f32.mrb[0].mxu0
  %v631 = vadd.f32 0.0, %v630
  %v632 = vpop.f32.mrb[0].mxu0
  %v633 = vadd.f32 0.0, %v632
  %634 = vdwg.mxu0
  %v635 = vld [vmem:[%s3] sm:$0xff]
  %v636 = vld [vmem:[%s3 + $0x8] sm:$0xff]
  %v637 = vld [vmem:[%s3 + $0x10] sm:$0xff]
  %v638 = vld [vmem:[%s3 + $0x18] sm:$0xff]
  %v639 = vld [vmem:[%s3 + $0x20] sm:$0xff]
  %v640 = vld [vmem:[%s3 + $0x28] sm:$0xff]
  %v641 = vld [vmem:[%s3 + $0x30] sm:$0xff]
  %v642 = vld [vmem:[%s3 + $0x38] sm:$0xff]
  %v643 = vld [vmem:[%s3 + $0x40] sm:$0xff]
  %v644 = vld [vmem:[%s3 + $0x48] sm:$0xff]
  %v645 = vld [vmem:[%s3 + $0x50] sm:$0xff]
  %v646 = vld [vmem:[%s3 + $0x58] sm:$0xff]
  %v647 = vld [vmem:[%s3 + $0x60] sm:$0xff]
  %v648 = vld [vmem:[%s3 + $0x68] sm:$0xff]
  %v649 = vld [vmem:[%s3 + $0x70] sm:$0xff]
  %v650 = vld [vmem:[%s3 + $0x78] sm:$0xff]
  %v652 = vsel %vm497, %v314, 0
  %v655 = vsel %vm497, %v319, 0
  %v658 = vsel %vm497, %v324, 0
  %v661 = vsel %vm497, %v329, 0
  %663 = vmatprep.subr.mxu0 %v636
  %664 = vmatpush1.msra.mxu0 %v635
  %665 = vmatprep.subr.mxu0 %v638
  %666 = vmatpush1.msra.mxu0 %v637
  %667 = vmatprep.subr.mxu0 %v640
  %668 = vmatpush1.msra.mxu0 %v639
  %669 = vmatprep.subr.mxu0 %v642
  %670 = vmatpush1.msra.mxu0 %v641
  %671 = vmatprep.subr.mxu0 %v644
  %672 = vmatpush1.msra.mxu0 %v643
  %673 = vmatprep.subr.mxu0 %v646
  %674 = vmatpush1.msra.mxu0 %v645
  %675 = vmatprep.subr.mxu0 %v648
  %676 = vmatpush1.msra.mxu0 %v647
  %677 = vmatprep.subr.mxu0 %v650
  %678 = vmatpush1.msra.mxu0 %v649
  %679 = vmatprep.subr.mxu0 0.0
  %680 = vmatpush1.msra.mxu0 0.0
  %681 = vmatprep.subr.mxu0 0.0
  %682 = vmatpush1.msra.mxu0 0.0
  %683 = vmatprep.subr.mxu0 0.0
  %684 = vmatpush1.msra.mxu0 0.0
  %685 = vmatprep.subr.mxu0 0.0
  %686 = vmatpush1.msra.mxu0 0.0
  %687 = vmatprep.subr.mxu0 0.0
  %688 = vmatpush1.msra.mxu0 0.0
  %689 = vmatprep.subr.mxu0 0.0
  %690 = vmatpush1.msra.mxu0 0.0
  %691 = vmatprep.subr.mxu0 0.0
  %692 = vmatpush1.msra.mxu0 0.0
  %693 = vmatprep.subr.mxu0 0.0
  %694 = vmatpush1.msra.mxu0 0.0
  %695 = vmatprep.subr.mxu0 0.0
  %696 = vmatpush1.msra.mxu0 0.0
  %697 = vmatprep.subr.mxu0 0.0
  %698 = vmatpush1.msra.mxu0 0.0
  %699 = vmatprep.subr.mxu0 0.0
  %700 = vmatpush1.msra.mxu0 0.0
  %701 = vmatprep.subr.mxu0 0.0
  %702 = vmatpush1.msra.mxu0 0.0
  %703 = vmatprep.subr.mxu0 0.0
  %704 = vmatpush1.msra.mxu0 0.0
  %705 = vmatprep.subr.mxu0 0.0
  %706 = vmatpush1.msra.mxu0 0.0
  %707 = vmatprep.subr.mxu0 0.0
  %708 = vmatpush1.msra.mxu0 0.0
  %709 = vmatprep.subr.mxu0 0.0
  %710 = vmatpush1.msra.mxu0 0.0
  %711 = vmatprep.subr.mxu0 0.0
  %712 = vmatpush1.msra.mxu0 0.0
  %713 = vmatprep.subr.mxu0 0.0
  %714 = vmatpush1.msra.mxu0 0.0
  %715 = vmatprep.subr.mxu0 0.0
  %716 = vmatpush1.msra.mxu0 0.0
  %717 = vmatprep.subr.mxu0 0.0
  %718 = vmatpush1.msra.mxu0 0.0
  %719 = vmatprep.subr.mxu0 0.0
  %720 = vmatpush1.msra.mxu0 0.0
  %721 = vmatprep.subr.mxu0 0.0
  %722 = vmatpush1.msra.mxu0 0.0
  %723 = vmatprep.subr.mxu0 0.0
  %724 = vmatpush1.msra.mxu0 0.0
  %725 = vmatprep.subr.mxu0 0.0
  %726 = vmatpush1.msra.mxu0 0.0
  %727 = vmatprep.mubr.f32.mxu0 0.0
  %728 = vmatmul.mubr.f32.gmra.mrb[0].mxu0 %v652
  %v729 = vpop.f32.mrb[0].mxu0
  %v730 = vadd.f32 0.0, %v729
  %v731 = vpop.f32.mrb[0].mxu0
  %v732 = vadd.f32 0.0, %v731
  %733 = vmatprep.mubr.f32.mxu0 0.0
  %734 = vmatmul.mubr.f32.gmra.mrb[0].mxu0 %v655
  %v735 = vpop.f32.mrb[0].mxu0
  %v736 = vadd.f32 0.0, %v735
  %v737 = vpop.f32.mrb[0].mxu0
  %v738 = vadd.f32 0.0, %v737
  %739 = vmatprep.mubr.f32.mxu0 0.0
  %740 = vmatmul.mubr.f32.gmra.mrb[0].mxu0 %v658
  %v741 = vpop.f32.mrb[0].mxu0
  %v742 = vadd.f32 0.0, %v741
  %v743 = vpop.f32.mrb[0].mxu0
  %v744 = vadd.f32 0.0, %v743
  %745 = vmatprep.mubr.f32.mxu0 0.0
  %746 = vmatmul.mubr.f32.gmra.mrb[0].mxu0 %v661
  %v747 = vpop.f32.mrb[0].mxu0
  %v748 = vadd.f32 0.0, %v747
  %v749 = vpop.f32.mrb[0].mxu0
  %v750 = vadd.f32 0.0, %v749
  %751 = vdwg.mxu0
  %v752 = vadd.f32 %v589, %v730
  %v753 = vadd.f32 %v591, %v732
  %v754 = vadd.f32 %v595, %v736
  %v755 = vadd.f32 %v597, %v738
  %v756 = vadd.f32 %v601, %v742
  %v757 = vadd.f32 %v603, %v744
  %v758 = vadd.f32 %v607, %v748
  %v759 = vadd.f32 %v609, %v750
  %v760 = vadd.f32 %v752, %v459
  %v761 = vadd.f32 %v753, %v461
  %v762 = vadd.f32 %v754, %v465
  %v763 = vadd.f32 %v755, %v467
  %v764 = vadd.f32 %v756, %v471
  %v765 = vadd.f32 %v757, %v473
  %v766 = vadd.f32 %v758, %v477
  %v767 = vadd.f32 %v759, %v479
  %v768 = vxor.u32 %v760, 2147483648
  %v769 = vxor.u32 %v761, 2147483648
  %v770 = vxor.u32 %v762, 2147483648
  %v771 = vxor.u32 %v763, 2147483648
  %v772 = vxor.u32 %v764, 2147483648
  %v773 = vxor.u32 %v765, 2147483648
  %v774 = vxor.u32 %v766, 2147483648
  %v775 = vxor.u32 %v767, 2147483648
  %v776 = vmul.f32 %v768, 1.442695
  %v777 = vpow.pop %v776
  %v778 = vmul.f32 %v769, 1.442695
  %v779 = vpow.pop %v778
  %v780 = vmul.f32 %v770, 1.442695
  %v781 = vpow.pop %v780
  %v782 = vmul.f32 %v771, 1.442695
  %v783 = vpow.pop %v782
  %v784 = vmul.f32 %v772, 1.442695
  %v785 = vpow.pop %v784
  %v786 = vmul.f32 %v773, 1.442695
  %v787 = vpow.pop %v786
  %v788 = vmul.f32 %v774, 1.442695
  %v789 = vpow.pop %v788
  %v790 = vmul.f32 %v775, 1.442695
  %v791 = vpow.pop %v790
  %v792 = vadd.f32 %v777, 1.0
  %v793 = vadd.f32 %v779, 1.0
  %v794 = vadd.f32 %v781, 1.0
  %v795 = vadd.f32 %v783, 1.0
  %v796 = vadd.f32 %v785, 1.0
  %v797 = vadd.f32 %v787, 1.0
  %v798 = vadd.f32 %v789, 1.0
  %v799 = vadd.f32 %v791, 1.0
  %v800 = vrcp.pop %v792
  %v801 = vmul.f32 1.0, %v800
  %v802 = vrcp.pop %v793
  %v803 = vmul.f32 1.0, %v802
  %v804 = vrcp.pop %v794
  %v805 = vmul.f32 1.0, %v804
  %v806 = vrcp.pop %v795
  %v807 = vmul.f32 1.0, %v806
  %v808 = vrcp.pop %v796
  %v809 = vmul.f32 1.0, %v808
  %v810 = vrcp.pop %v797
  %v811 = vmul.f32 1.0, %v810
  %v812 = vrcp.pop %v798
  %v813 = vmul.f32 1.0, %v812
  %v814 = vrcp.pop %v799
  %v815 = vmul.f32 1.0, %v814
  %v816 = vmul.f32 %v613, %v801
  %v817 = vmul.f32 %v615, %v803
  %v818 = vmul.f32 %v619, %v805
  %v819 = vmul.f32 %v621, %v807
  %v820 = vmul.f32 %v625, %v809
  %v821 = vmul.f32 %v627, %v811
  %v822 = vmul.f32 %v631, %v813
  %v823 = vmul.f32 %v633, %v815
  %824 = vst [vmem:[#allocation2] sm:$0xff] %v816
  %825 = vst [vmem:[#allocation2 + $0x8] sm:$0xff] %v817
  %826 = vst [vmem:[#allocation2 + $0x10] sm:$0xff] %v818
  %827 = vst [vmem:[#allocation2 + $0x18] sm:$0xff] %v819
  %828 = vst [vmem:[#allocation2 + $0x20] sm:$0xff] %v820
  %829 = vst [vmem:[#allocation2 + $0x28] sm:$0xff] %v821
  %830 = vst [vmem:[#allocation2 + $0x30] sm:$0xff] %v822
  %831 = vst [vmem:[#allocation2 + $0x38] sm:$0xff] %v823
  %832 = vst [vmem:[#allocation2 + $0x40] sm:$0xff] %v801
  %833 = vst [vmem:[#allocation2 + $0x48] sm:$0xff] %v803
  %834 = vst [vmem:[#allocation2 + $0x50] sm:$0xff] %v805
  %835 = vst [vmem:[#allocation2 + $0x58] sm:$0xff] %v807
  %836 = vst [vmem:[#allocation2 + $0x60] sm:$0xff] %v809
  %837 = vst [vmem:[#allocation2 + $0x68] sm:$0xff] %v811
  %838 = vst [vmem:[#allocation2 + $0x70] sm:$0xff] %v813
  %839 = vst [vmem:[#allocation2 + $0x78] sm:$0xff] %v815
  %v840 = vld [vmem:[#allocation2] sm:$0xff]
  %v841 = vld [vmem:[#allocation2 + $0x8] sm:$0xff]
  %v842 = vld [vmem:[#allocation2 + $0x10] sm:$0xff]
  %v843 = vld [vmem:[#allocation2 + $0x18] sm:$0xff]
  %v844 = vld [vmem:[#allocation2 + $0x20] sm:$0xff]
  %v845 = vld [vmem:[#allocation2 + $0x28] sm:$0xff]
  %v846 = vld [vmem:[#allocation2 + $0x30] sm:$0xff]
  %v847 = vld [vmem:[#allocation2 + $0x38] sm:$0xff]
  %v848 = vld [vmem:[#allocation2 + $0x40] sm:$0xff]
  %v849 = vld [vmem:[#allocation2 + $0x48] sm:$0xff]
  %v850 = vld [vmem:[#allocation2 + $0x50] sm:$0xff]
  %v851 = vld [vmem:[#allocation2 + $0x58] sm:$0xff]
  %v852 = vld [vmem:[#allocation2 + $0x60] sm:$0xff]
  %v853 = vld [vmem:[#allocation2 + $0x68] sm:$0xff]
  %v854 = vld [vmem:[#allocation2 + $0x70] sm:$0xff]
  %v855 = vld [vmem:[#allocation2 + $0x78] sm:$0xff]
  %v856 = vld [vmem:[%s4] sm:$0xff]
  %v857 = vld [vmem:[%s4 + $0x8] sm:$0xff]
  %v858 = vld [vmem:[%s4 + $0x10] sm:$0xff]
  %v859 = vld [vmem:[%s4 + $0x18] sm:$0xff]
  %v860 = vld [vmem:[%s4 + $0x20] sm:$0xff]
  %v861 = vld [vmem:[%s4 + $0x28] sm:$0xff]
  %v862 = vld [vmem:[%s4 + $0x30] sm:$0xff]
  %v863 = vld [vmem:[%s4 + $0x38] sm:$0xff]
  %v864 = vld [vmem:[%s4 + $0x40] sm:$0xff]
  %v865 = vld [vmem:[%s4 + $0x48] sm:$0xff]
  %v866 = vld [vmem:[%s4 + $0x50] sm:$0xff]
  %v867 = vld [vmem:[%s4 + $0x58] sm:$0xff]
  %v868 = vld [vmem:[%s4 + $0x60] sm:$0xff]
  %v869 = vld [vmem:[%s4 + $0x68] sm:$0xff]
  %v870 = vld [vmem:[%s4 + $0x70] sm:$0xff]
  %v871 = vld [vmem:[%s4 + $0x78] sm:$0xff]
  %v872 = vld [vmem:[%s4 + $0x80] sm:$0xff]
  %v873 = vld [vmem:[%s4 + $0x88] sm:$0xff]
  %v874 = vld [vmem:[%s4 + $0x90] sm:$0xff]
  %v875 = vld [vmem:[%s4 + $0x98] sm:$0xff]
  %v876 = vld [vmem:[%s4 + $0xa0] sm:$0xff]
  %v877 = vld [vmem:[%s4 + $0xa8] sm:$0xff]
  %v878 = vld [vmem:[%s4 + $0xb0] sm:$0xff]
  %v879 = vld [vmem:[%s4 + $0xb8] sm:$0xff]
  %v880 = vld [vmem:[%s4 + $0xc0] sm:$0xff]
  %v881 = vld [vmem:[%s4 + $0xc8] sm:$0xff]
  %v882 = vld [vmem:[%s4 + $0xd0] sm:$0xff]
  %v883 = vld [vmem:[%s4 + $0xd8] sm:$0xff]
  %v884 = vld [vmem:[%s4 + $0xe0] sm:$0xff]
  %v885 = vld [vmem:[%s4 + $0xe8] sm:$0xff]
  %v886 = vld [vmem:[%s4 + $0xf0] sm:$0xff]
  %v887 = vld [vmem:[%s4 + $0xf8] sm:$0xff]
  %888 = vmatprep.subr.mxu0 0.0
  %889 = vmatpush1.msra.mxu0 %v856
  %890 = vmatprep.subr.mxu0 0.0
  %891 = vmatpush1.msra.mxu0 %v857
  %892 = vmatprep.subr.mxu0 0.0
  %893 = vmatpush1.msra.mxu0 %v858
  %894 = vmatprep.subr.mxu0 0.0
  %895 = vmatpush1.msra.mxu0 %v859
  %896 = vmatprep.subr.mxu0 0.0
  %897 = vmatpush1.msra.mxu0 %v860
  %898 = vmatprep.subr.mxu0 0.0
  %899 = vmatpush1.msra.mxu0 %v861
  %900 = vmatprep.subr.mxu0 0.0
  %901 = vmatpush1.msra.mxu0 %v862
  %902 = vmatprep.subr.mxu0 0.0
  %903 = vmatpush1.msra.mxu0 %v863
  %904 = vmatprep.subr.mxu0 0.0
  %905 = vmatpush1.msra.mxu0 %v864
  %906 = vmatprep.subr.mxu0 0.0
  %907 = vmatpush1.msra.mxu0 %v865
  %908 = vmatprep.subr.mxu0 0.0
  %909 = vmatpush1.msra.mxu0 %v866
  %910 = vmatprep.subr.mxu0 0.0
  %911 = vmatpush1.msra.mxu0 %v867
  %912 = vmatprep.subr.mxu0 0.0
  %913 = vmatpush1.msra.mxu0 %v868
  %914 = vmatprep.subr.mxu0 0.0
  %915 = vmatpush1.msra.mxu0 %v869
  %916 = vmatprep.subr.mxu0 0.0
  %917 = vmatpush1.msra.mxu0 %v870
  %918 = vmatprep.subr.mxu0 0.0
  %919 = vmatpush1.msra.mxu0 %v871
  %920 = vmatprep.subr.mxu0 0.0
  %921 = vmatpush1.msra.mxu0 %v872
  %922 = vmatprep.subr.mxu0 0.0
  %923 = vmatpush1.msra.mxu0 %v873
  %924 = vmatprep.subr.mxu0 0.0
  %925 = vmatpush1.msra.mxu0 %v874
  %926 = vmatprep.subr.mxu0 0.0
  %927 = vmatpush1.msra.mxu0 %v875
  %928 = vmatprep.subr.mxu0 0.0
  %929 = vmatpush1.msra.mxu0 %v876
  %930 = vmatprep.subr.mxu0 0.0
  %931 = vmatpush1.msra.mxu0 %v877
  %932 = vmatprep.subr.mxu0 0.0
  %933 = vmatpush1.msra.mxu0 %v878
  %934 = vmatprep.subr.mxu0 0.0
  %935 = vmatpush1.msra.mxu0 %v879
  %936 = vmatprep.subr.mxu0 0.0
  %937 = vmatpush1.msra.mxu0 %v880
  %938 = vmatprep.subr.mxu0 0.0
  %939 = vmatpush1.msra.mxu0 %v881
  %940 = vmatprep.subr.mxu0 0.0
  %941 = vmatpush1.msra.mxu0 %v882
  %942 = vmatprep.subr.mxu0 0.0
  %943 = vmatpush1.msra.mxu0 %v883
  %944 = vmatprep.subr.mxu0 0.0
  %945 = vmatpush1.msra.mxu0 %v884
  %946 = vmatprep.subr.mxu0 0.0
  %947 = vmatpush1.msra.mxu0 %v885
  %948 = vmatprep.subr.mxu0 0.0
  %949 = vmatpush1.msra.mxu0 %v886
  %950 = vmatprep.subr.mxu0 0.0
  %951 = vmatpush1.msra.mxu0 %v887
  %952 = vmatprep.mubr.f32.mxu0 %v841
  %953 = vmatmul.mubr.f32.gmra.mrb[0].mxu0 %v840
  %v954 = vpop.f32.mrb[0].mxu0
  %v955 = vadd.f32 0.0, %v954
  %v956 = vpop.f32.mrb[0].mxu0
  %957 = vmatprep.mubr.f32.mxu0 %v843
  %958 = vmatmul.mubr.f32.gmra.mrb[0].mxu0 %v842
  %v959 = vpop.f32.mrb[0].mxu0
  %v960 = vadd.f32 0.0, %v959
  %v961 = vpop.f32.mrb[0].mxu0
  %962 = vmatprep.mubr.f32.mxu0 %v845
  %963 = vmatmul.mubr.f32.gmra.mrb[0].mxu0 %v844
  %v964 = vpop.f32.mrb[0].mxu0
  %v965 = vadd.f32 0.0, %v964
  %v966 = vpop.f32.mrb[0].mxu0
  %967 = vmatprep.mubr.f32.mxu0 %v847
  %968 = vmatmul.mubr.f32.gmra.mrb[0].mxu0 %v846
  %v969 = vpop.f32.mrb[0].mxu0
  %v970 = vadd.f32 0.0, %v969
  %v971 = vpop.f32.mrb[0].mxu0
  %972 = vmatprep.mubr.f32.mxu0 %v849
  %973 = vmatmul.mubr.f32.gmra.mrb[0].mxu0 %v848
  %v974 = vpop.f32.mrb[0].mxu0
  %v975 = vadd.f32 0.0, %v974
  %v976 = vpop.f32.mrb[0].mxu0
  %977 = vmatprep.mubr.f32.mxu0 %v851
  %978 = vmatmul.mubr.f32.gmra.mrb[0].mxu0 %v850
  %v979 = vpop.f32.mrb[0].mxu0
  %v980 = vadd.f32 0.0, %v979
  %v981 = vpop.f32.mrb[0].mxu0
  %982 = vmatprep.mubr.f32.mxu0 %v853
  %983 = vmatmul.mubr.f32.gmra.mrb[0].mxu0 %v852
  %v984 = vpop.f32.mrb[0].mxu0
  %v985 = vadd.f32 0.0, %v984
  %v986 = vpop.f32.mrb[0].mxu0
  %987 = vmatprep.mubr.f32.mxu0 %v855
  %988 = vmatmul.mubr.f32.gmra.mrb[0].mxu0 %v854
  %v989 = vpop.f32.mrb[0].mxu0
  %v990 = vadd.f32 0.0, %v989
  %v991 = vpop.f32.mrb[0].mxu0
  %992 = vdwg.mxu0
  %v993 = vadd.f32 %v975, 1e-06
  %v994 = vadd.f32 %v980, 1e-06
  %v995 = vadd.f32 %v985, 1e-06
  %v996 = vadd.f32 %v990, 1e-06
  %v997 = vrcp.pop %v993
  %v998 = vmul.f32 %v955, %v997
  %v999 = vrcp.pop %v994
  %v1000 = vmul.f32 %v960, %v999
  %v1001 = vrcp.pop %v995
  %v1002 = vmul.f32 %v965, %v1001
  %v1003 = vrcp.pop %v996
  %v1004 = vmul.f32 %v970, %v1003
  %v1005 = vadd.f32 %v334, %v998
  %v1006 = vadd.f32 %v339, %v1000
  %v1007 = vadd.f32 %v344, %v1002
  %v1008 = vadd.f32 %v349, %v1004
  %v1009 = vmax.f32 %v1005, 0.0
  %v1010 = vmax.f32 %v1006, 0.0
  %v1011 = vmax.f32 %v1007, 0.0
  %v1012 = vmax.f32 %v1008, 0.0
  %v1013 = vadd.f32 %v1009, %v34
  %v1014 = vadd.f32 %v1010, %v35
  %v1015 = vadd.f32 %v1011, %v36
  %v1016 = vadd.f32 %v1012, %v37
  %1017 = vst.msk [vmem:[%s9] sm:$0xff] %vm497, %v1013
  %1018 = vst.msk [vmem:[%s9 + $0x8] sm:$0xff] %vm497, %v1014
  %1019 = vst.msk [vmem:[%s9 + $0x10] sm:$0xff] %vm497, %v1015
  %1020 = vst.msk [vmem:[%s9 + $0x18] sm:$0xff] %vm497, %v1016
  %v1021 = vmax.f32 %v760, 0.0
  %v1022 = vmax.f32 %v761, 0.0
  %v1023 = vmax.f32 %v762, 0.0
  %v1024 = vmax.f32 %v763, 0.0
  %v1025 = vmax.f32 %v764, 0.0
  %v1026 = vmax.f32 %v765, 0.0
  %v1027 = vmax.f32 %v766, 0.0
  %v1028 = vmax.f32 %v767, 0.0
  %v1029 = vadd.f32 %v1021, %v38
  %v1030 = vadd.f32 %v1022, %v39
  %v1031 = vadd.f32 %v1023, %v40
  %v1032 = vadd.f32 %v1024, %v41
  %v1033 = vadd.f32 %v1025, %v42
  %v1034 = vadd.f32 %v1026, %v43
  %v1035 = vadd.f32 %v1027, %v44
  %v1036 = vadd.f32 %v1028, %v45
  %1037 = vst [vmem:[%s10] sm:$0xff] %v1029
  %1038 = vst [vmem:[%s10 + $0x8] sm:$0xff] %v1030
  %1039 = vst [vmem:[%s10 + $0x10] sm:$0xff] %v1031
  %1040 = vst [vmem:[%s10 + $0x18] sm:$0xff] %v1032
  %1041 = vst [vmem:[%s10 + $0x20] sm:$0xff] %v1033
  %1042 = vst [vmem:[%s10 + $0x28] sm:$0xff] %v1034
  %1043 = vst [vmem:[%s10 + $0x30] sm:$0xff] %v1035
  %1044 = vst [vmem:[%s10 + $0x38] sm:$0xff] %v1036
  // Predicated region
  $region38: #{gatedgcn_forward.1} parent=0 // pred_check
    _
  $region39: #{gatedgcn_forward.1} parent=0 // pred_check_branch
    %1046 = sbr.rel (0) target = $region41
  $region40: #{gatedgcn_forward.1} parent=0 // pred_region
    _
  $region41: #{gatedgcn_forward.1} parent=0 // pred_fallthru
    _
  // Predicated region
  $region42: #{gatedgcn_forward.1} parent=0 // pred_check
    _
  $region43: #{gatedgcn_forward.1} parent=0 // pred_check_branch
    %1048 = sbr.rel (0) target = $region45
  $region44: #{gatedgcn_forward.1} parent=0 // pred_region
    _
  $region45: #{gatedgcn_forward.1} parent=0 // pred_fallthru
    _
  // Predicated region
  $region46: #{gatedgcn_forward.1} parent=0 // pred_check
    _
  $region47: #{gatedgcn_forward.1} parent=0 // pred_check_branch
    %1050 = sbr.rel (0) target = $region49
  $region48: #{gatedgcn_forward.1} parent=0 // pred_region
    _
  $region49: #{gatedgcn_forward.1} parent=0 // pred_fallthru
    _
  // Predicated region
  $region50: #{gatedgcn_forward.1} parent=0 // pred_check
    _
  $region51: #{gatedgcn_forward.1} parent=0 // pred_check_branch
    %1052 = sbr.rel (0) target = $region53
  $region52: #{gatedgcn_forward.1} parent=0 // pred_region
    _
  $region53: #{gatedgcn_forward.1} parent=0 // pred_fallthru
    _

</llo_original>
